<compile_context>
chip_gen: v7x
topology: tpu7x:2x2x1
jax: 0.10.0
libtpu: 0.0.40
codegen_flags: <defaults>
</compile_context>

<pallas_src>
import jax
import jax.numpy as jnp
import numpy as np
from jax.experimental import pallas as pl
from jax.experimental.pallas import tpu as pltpu


def _round_up(x, m):
    return ((x + m - 1) // m) * m


def _deconv_bn_silu_kernel(x_ref, w_ref, b_ref, o_ref):
    # MXU matmul (bf16 operands, f32 accumulation).  BN scale is pre-folded into the
    # weight columns, so the epilogue is bias + SiLU; exp / reciprocal run on the EUP.
    acc = jnp.dot(x_ref[...], w_ref[...], preferred_element_type=jnp.float32)
    y = acc + b_ref[...]
    sig = pl.reciprocal(1.0 + jnp.exp(-y))          # exact; EUP slot is idle anyway
    o_ref[...] = (y * sig).astype(o_ref.dtype)


def fold_conv_transpose_bn(weight, gamma, beta, running_mean, running_var, *,
                           eps=1e-5, compute_dtype=jnp.bfloat16):
    """Pre-fold BatchNorm (inference) into the ConvTranspose weight.

    Run ONCE at model-load time.  Returns:
      wm        : (C1, Nc_pad) compute_dtype, columns ordered (a, b, c2), lane-padded
      bias_cols : (1, Nc_pad) float32 per-column BN bias
      (C2, kh, kw)
    """
    C1, C2, kh, kw = weight.shape                    # PyTorch ConvTranspose2d layout
    assert kh == kw
    Nc = kh * kw * C2
    Nc_pad = _round_up(Nc, 128)                      # lane multiple only (no over-pad)

    # (C1, C2, kh, kw) -> (C1, kh, kw, C2) -> (C1, kh*kw*C2); columns = (a, b, c2)
    wm = jnp.transpose(weight, (0, 2, 3, 1)).reshape(C1, Nc)

    inv_std = 1.0 / jnp.sqrt(running_var + eps)
    scale = gamma * inv_std                          # (C2,)
    bias = beta - running_mean * scale               # (C2,)
    wm = wm * jnp.tile(scale, kh * kw)[None, :]      # c2 is innermost in the columns
    bias_cols = jnp.tile(bias, kh * kw)              # (Nc,)

    if Nc_pad != Nc:
        wm = jnp.pad(wm, ((0, 0), (0, Nc_pad - Nc)))
        bias_cols = jnp.pad(bias_cols, (0, Nc_pad - Nc))

    return (wm.astype(compute_dtype),
            bias_cols.reshape(1, Nc_pad).astype(jnp.float32),
            (C2, kh, kw))


def conv_transpose_bn_silu(x, wm, bias_cols, c2, k, *, stride=2, padding=0,
                           tm=512, tn=512, out_dtype=jnp.bfloat16,
                           x_layout="NCHW", weight_resident_bytes=8 * 1024 * 1024):
    """ConvTranspose2d(bias=False) + BatchNorm2d(eval) + SiLU, k == stride only.

    `wm`, `bias_cols` come from fold_conv_transpose_bn (precomputed once).
    Returns NCHW (N, C2, H_out, W_out) in `out_dtype`.
    """
    # TODO(synk): overlapping transposed conv (stride != k) needs a scatter/accumulate
    # epilogue across neighbouring output tiles; only the module default (k == s) is done.
    assert stride == k, "only non-overlapping ConvTranspose (k == s) is implemented"
    p = padding

    C1, Nc_pad = wm.shape
    cd_bytes = jnp.dtype(wm.dtype).itemsize
    ob_bytes = jnp.dtype(out_dtype).itemsize
    Nc = k * k * c2

    # --- activation matrix: (M, C1).  NHWC upstream avoids the transpose entirely. ---
    if x_layout == "NCHW":
        N, C1x, H, W = x.shape
        assert C1x == C1
        xm = jnp.transpose(x, (0, 2, 3, 1)).reshape(N * H * W, C1).astype(wm.dtype)
    else:  # "NHWC": zero-copy reshape
        N, H, W, C1x = x.shape
        assert C1x == C1
        xm = x.reshape(N * H * W, C1).astype(wm.dtype)
    M = N * H * W

    # --- tiling ---
    lane = 128
    if C1 * Nc_pad * cd_bytes <= weight_resident_bytes:
        tn_eff = Nc_pad                               # weight resident: DMA'd once
    else:
        tn_eff = max(lane, (min(tn, Nc_pad) // lane) * lane)
        while Nc_pad % tn_eff:                        # largest 128-multiple divisor
            tn_eff -= lane
    num_j = Nc_pad // tn_eff

    tm_eff = min(tm, _round_up(M, 16))
    tm_eff = max(16, (tm_eff // 16) * 16)             # bf16 sublane packing
    num_i = pl.cdiv(M, tm_eff)                        # ragged last tile: OOB-discarded

    # VMEM budget (double-buffered blocks) -> explicit limit with headroom.
    vmem_need = (2 * tm_eff * C1 * cd_bytes           # activations
                 + 2 * C1 * tn_eff * cd_bytes         # folded weight
                 + 2 * 8 * tn_eff * 4                 # bias (sublane-padded f32)
                 + 2 * tm_eff * tn_eff * ob_bytes)    # output tile
    vmem_limit = min(100 * 1024 * 1024,
                     max(16 * 1024 * 1024, int(vmem_need * 1.25) + (2 << 20)))

    cost = pl.CostEstimate(
        flops=2 * M * Nc_pad * C1,
        transcendentals=M * Nc_pad,
        bytes_accessed=int(num_j * M * C1 * cd_bytes + C1 * Nc_pad * cd_bytes
                           + Nc_pad * 4 + M * Nc_pad * ob_bytes))

    # Grid: j (weight columns) OUTER, i (pixel rows) INNER -> the weight tile is held
    # constant across the whole inner M sweep; with the resident-weight config num_j==1
    # and the weight/bias blocks are fetched exactly once.
    out = pl.pallas_call(
        _deconv_bn_silu_kernel,
        out_shape=jax.ShapeDtypeStruct((M, Nc_pad), out_dtype),
        grid_spec=pltpu.PrefetchScalarGridSpec(
            num_scalar_prefetch=0,
            grid=(num_j, num_i),
            in_specs=[
                pl.BlockSpec((tm_eff, C1), lambda j, i: (i, 0)),    # activations
                pl.BlockSpec((C1, tn_eff), lambda j, i: (0, j)),    # BN-folded weight
                pl.BlockSpec((1, tn_eff), lambda j, i: (0, j)),     # BN bias
            ],
            out_specs=pl.BlockSpec((tm_eff, tn_eff), lambda j, i: (i, j)),
        ),
        compiler_params=pltpu.CompilerParams(
            dimension_semantics=("parallel", "parallel"),
            vmem_limit_bytes=vmem_limit),
        cost_estimate=cost,
    )(xm, wm, bias_cols)

    # Single fused pixel-shuffle + NHWC->NCHW transpose (one HBM round-trip, bf16):
    # (M, Nc) -> (N, H, W, k, k, C2) -> (N, C2, H, k, W, k) -> (N, C2, H*k, W*k)
    out = out[:, :Nc].reshape(N, H, W, k, k, c2)
    out = jnp.transpose(out, (0, 5, 1, 3, 2, 4)).reshape(N, c2, H * k, W * k)
    if p:
        out = out[:, :, p:H * k - p, p:W * k - p]
    return out


def _reference(x, w, gamma, beta, rm, rv, s, p, eps=1e-5):
    # ConvTranspose2d == conv of the zero-stuffed (lhs-dilated) input with the
    # spatially-flipped, io-swapped kernel, padding k-1-p.  Then BN(eval) + SiLU.
    C1, C2, kh, kw = w.shape
    w_oihw = jnp.transpose(jnp.flip(w, axis=(2, 3)), (1, 0, 2, 3))
    y = jax.lax.conv_general_dilated(
        x, w_oihw, window_strides=(1, 1),
        padding=[(kh - 1 - p, kh - 1 - p), (kw - 1 - p, kw - 1 - p)],
        lhs_dilation=(s, s),
        dimension_numbers=("NCHW", "OIHW", "NCHW"),
        precision=jax.lax.Precision.HIGHEST)
    scale = gamma / jnp.sqrt(rv + eps)
    bias = beta - rm * scale
    y = y * scale[None, :, None, None] + bias[None, :, None, None]
    return y * jax.nn.sigmoid(y)


if __name__ == "__main__":
    # ConvTranspose(c1=4, c2=8) defaults: k=2, s=2, p=0, bn=True, act=SiLU
    N, C1, H, W = 2, 4, 16, 16
    C2, K, S, P = 8, 2, 2, 0

    key = jax.random.PRNGKey(0)
    kx, kw_, kg, kb, km, kv = jax.random.split(key, 6)

    x = jax.random.normal(kx, (N, C1, H, W), dtype=jnp.float32)
    fan_in = C2 * K * K
    bound = float(np.sqrt(1.0 / fan_in))
    # PyTorch ConvTranspose2d weight layout: (C1, C2, kH, kW), bias=False (bn=True)
    weight = jax.random.uniform(kw_, (C1, C2, K, K), minval=-bound, maxval=bound,
                                dtype=jnp.float32)
    gamma = jax.random.uniform(kg, (C2,), minval=0.5, maxval=1.5, dtype=jnp.float32)
    beta = jax.random.normal(kb, (C2,), dtype=jnp.float32) * 0.1
    running_mean = jax.random.normal(km, (C2,), dtype=jnp.float32) * 0.1
    running_var = jax.random.uniform(kv, (C2,), minval=0.5, maxval=1.5,
                                     dtype=jnp.float32)

    # BN fold / weight packing done ONCE (model-load time); forward only runs the kernel.
    wm, bias_cols, (c2, kh, kw) = fold_conv_transpose_bn(
        weight, gamma, beta, running_mean, running_var)

    # tm=128 here only to exercise a multi-step grid at this tiny test shape;
    # production default is tm=512 (multiple of 256 so v7x megacore splits evenly).
    out = conv_transpose_bn_silu(x, wm, bias_cols, c2, kh,
                                 stride=S, padding=P, tm=128)
    out = jax.block_until_ready(out)

    ref = _reference(x, weight, gamma, beta, running_mean, running_var, S, P)
    assert out.shape == ref.shape == (N, C2, 2 * H, 2 * W)
    # bf16 matmul operands + bf16 output -> relaxed tolerance (inference trade-off).
    np.testing.assert_allclose(np.asarray(out.astype(jnp.float32)),
                               np.asarray(ref, dtype=np.float32),
                               rtol=5e-2, atol=5e-2)
    print("KERNEL_OK")
</pallas_src>

<mosaic_0001>
module attributes {stable_mosaic.version = 11 : i64} {
  func.func @_deconv_bn_silu_kernel(%arg0: i32, %arg1: i32, %arg2: memref<128x4xbf16, #tpu.memory_space<vmem>>, %arg3: memref<4x128xbf16, #tpu.memory_space<vmem>>, %arg4: memref<1x128xf32, #tpu.memory_space<vmem>>, %arg5: memref<128x128xbf16, #tpu.memory_space<vmem>>) attributes {dimension_semantics = [#tpu.dimension_semantics<parallel>, #tpu.dimension_semantics<parallel>], iteration_bounds = array<i64: 1, 4>, scalar_prefetch = 0 : i64, scratch_operands = 0 : i64, tpu.core_type = #tpu.core_type<tc>, window_params = [{transform_indices = @transform_0, window_bounds = array<i64: 128, 4>}, {transform_indices = @transform_1, window_bounds = array<i64: 4, 128>}, {transform_indices = @transform_2, window_bounds = array<i64: 1, 128>}, {transform_indices = @transform_3, window_bounds = array<i64: 128, 128>}]} {
    %c0 = arith.constant 0 : index
    %c0_0 = arith.constant 0 : index
    %0 = vector.load %arg2[%c0, %c0_0] : memref<128x4xbf16, #tpu.memory_space<vmem>>, vector<128x4xbf16>
    %c0_1 = arith.constant 0 : index
    %c0_2 = arith.constant 0 : index
    %1 = vector.load %arg3[%c0_1, %c0_2] : memref<4x128xbf16, #tpu.memory_space<vmem>>, vector<4x128xbf16>
    %cst = arith.constant dense<0.000000e+00> : vector<128x128xf32>
    %2 = tpu.matmul %0, %1, %cst {dimension_numbers = #tpu.dot_dimension_numbers<[1], [0], [0], [1], [0, 0, 1, 1], [], []>} : vector<128x4xbf16>, vector<4x128xbf16>, vector<128x128xf32> -> vector<128x128xf32>
    %c0_3 = arith.constant 0 : index
    %c0_4 = arith.constant 0 : index
    %3 = vector.load %arg4[%c0_3, %c0_4] : memref<1x128xf32, #tpu.memory_space<vmem>>, vector<1x128xf32>
    %4 = vector.broadcast %3 : vector<1x128xf32> to vector<128x128xf32>
    %5 = arith.addf %2, %4 : vector<128x128xf32>
    %cst_5 = arith.constant 0.000000e+00 : f32
    %6 = vector.broadcast %cst_5 : f32 to vector<128x128xf32>
    %7 = arith.subf %6, %5 : vector<128x128xf32>
    %8 = math.exp %7 : vector<128x128xf32>
    %cst_6 = arith.constant 1.000000e+00 : f32
    %9 = vector.broadcast %cst_6 : f32 to vector<128x128xf32>
    %10 = arith.addf %9, %8 : vector<128x128xf32>
    %11 = tpu.reciprocal %10 : vector<128x128xf32> -> vector<128x128xf32>
    %12 = arith.mulf %5, %11 : vector<128x128xf32>
    %13 = arith.truncf %12 : vector<128x128xf32> to vector<128x128xbf16>
    %c0_7 = arith.constant 0 : index
    %c0_8 = arith.constant 0 : index
    %14 = vector.load %arg5[%c0_7, %c0_8] : memref<128x128xbf16, #tpu.memory_space<vmem>>, vector<128x128xbf16>
    tpu.vector_store %arg5[%c0_7, %c0_8], %13 {strides = array<i32>} : memref<128x128xbf16, #tpu.memory_space<vmem>>, vector<128x128xbf16>,
    return
  }
  func.func @transform_0(%arg0: i32, %arg1: i32) -> (i32, i32) {
    %c0_i32 = arith.constant 0 : i32
    %c0_i32_0 = arith.constant 0 : i32
    return %arg1, %c0_i32 : i32, i32
  }
  func.func @transform_1(%arg0: i32, %arg1: i32) -> (i32, i32) {
    %c0_i32 = arith.constant 0 : i32
    %c0_i32_0 = arith.constant 0 : i32
    return %c0_i32, %arg0 : i32, i32
  }
  func.func @transform_2(%arg0: i32, %arg1: i32) -> (i32, i32) {
    %c0_i32 = arith.constant 0 : i32
    %c0_i32_0 = arith.constant 0 : i32
    return %c0_i32, %arg0 : i32, i32
  }
  func.func @transform_3(%arg0: i32, %arg1: i32) -> (i32, i32) {
    %c0_i32 = arith.constant 0 : i32
    return %arg1, %arg0 : i32, i32
  }
}

</mosaic_0001>

<llo_original>
// kernel: tpu_custom_call.1
$region0: #{tpu_custom_call.1}
  #allocation0 [shape = 'u32[]', space=smem, size = 0x4, offset = 0x4, fixed_abs, tag = 'smem constant byte address 0x4 - core index']
  #allocation1 [shape = 'u32[144,128]{1,0:T(1,128)}', space=vmem, size = 0x12000, scoped, tag = 'internal scratch']
  %s0 = inlined_call_operand.vmem [shape: bf16[512,4], index: 0, kind: input, shape index: {}]
  %s1 = inlined_call_operand.vmem [shape: bf16[4,128], index: 1, kind: input, shape index: {}]
  %s2 = inlined_call_operand.vmem [shape: f32[1,128], index: 2, kind: input, shape index: {}]
  %s3 = inlined_call_operand.hbm [shape: bf16[512,128], index: 3, kind: output, shape index: {}]
  %s4 = sld [smem:[#allocation0]]
  $region45: #{tpu_custom_call.1} parent=0
    _
  %s6 = ssub.s32 1, %s4
  %s7 = scalar_select 0, %s6, %s4
  $region1: #{tpu_custom_call.1} parent=0
    #allocation2 [shape = 'u8[65536]{0}', space=vmem, size = 0x10000, scoped, tag = 'output window, operand 0']
    #allocation3 [shape = 's32[2]{0}', space=sflag, size = 0x8, scoped, tag = 'scoped memory for tpu_custom_call.1']
    %8 = vsyncpa [#allocation3], 0
    %s9 = scalar_lea.sflag [#allocation3], 1
    %10 = vsyncpa %s9, 0
    loop: start=0, step=1, limit=6
    $region2: #{tpu_custom_call.1} parent=1 // loop_pre_header
      _
    $region3: #{tpu_custom_call.1} parent=1 // loop_header
      %s12 = sphi 0, %s16
      %p13 = scmp.ge.s32.totalorder %s12, 6
      %s19 = sphi 0, %s31
      %s20 = sphi 0, %s27
      %s21 = sphi 0, %s19
      %s22 = sphi 0, %s20
      %s23 = sphi 0, %s21
      %s24 = sphi 0, %s22
      %s34 = sphi 0, %s36
      %s37 = sphi 0, %s34
      %s38 = sphi 0, %s37
      %s54 = sphi 0, %s38
      %s60 = sphi 0, %s62
      %s63 = sphi 0, %s60
      %s64 = sphi 0, %s63
      %s80 = sphi 0, %s64
      %s86 = sphi 0, %s88
      %s89 = sphi 0, %s86
      %s90 = sphi 0, %s89
      %s106 = sphi 0, %s90
      %s114 = sphi 0, %s116
      %s117 = sphi 0, %s114
      %s118 = sphi 0, %s117
      %s134 = sphi 0, %s118
    $region4: #{tpu_custom_call.1} parent=1 // loop_header_branch
      %15 = sbr.rel (%p13) target = $region8
    $region5: #{tpu_custom_call.1} parent=1 // loop_body
      %s17 = ssub.s32 %s12, 1
      %s18 = ssub.s32 %s12, 2
      %s25 = sadd.s32 1, %s20
      %p26 = scmp.ge.s32.totalorder %s25, 4
      %s27 = scalar_select %p26, 0, %s25
      %s28 = sadd.s32 1, %s19
      %s29 = scalar_select %p26, %s28, %s19
      %p30 = scmp.ge.s32.totalorder %s29, 1
      %s31 = scalar_select %p30, 0, %s29
      %s32 = ssub.s32 %s20, %s27
      %p33 = scmp.eq.s32.totalorder %s32, 0
      %s35 = sadd.s32 %s34, 1
      %s36 = scalar_select %p33, %s34, %s35
      %p39 = pneg %p33
      %p40 = scmp.eq.s32.totalorder %s12, 3
      %p41 = por %p39, %p40
      %p42 = scmp.ne.s32.totalorder %s34, %s37
      %p43 = scmp.eq.s32.totalorder %s12, 0
      %p44 = por %p42, %p43
      %p45 = scmp.ne.s32.totalorder %s34, %s37
      %p46 = scmp.eq.s32.totalorder %s17, 3
      %p47 = por %p45, %p46
      %p48 = scmp.ne.s32.totalorder %s37, %s38
      %p49 = scmp.eq.s32.totalorder %s17, 0
      %p50 = por %p48, %p49
      %p51 = scmp.ne.s32.totalorder %s37, %s38
      %p52 = scmp.eq.s32.totalorder %s18, 3
      %p53 = por %p51, %p52
      %p55 = scmp.ne.s32.totalorder %s38, %s54
      %p56 = scmp.eq.s32.totalorder %s18, 0
      %p57 = por %p55, %p56
      %s58 = ssub.s32 %s19, %s31
      %p59 = scmp.eq.s32.totalorder %s58, 0
      %s61 = sadd.s32 %s60, 1
      %s62 = scalar_select %p59, %s60, %s61
      %p65 = pneg %p59
      %p66 = scmp.eq.s32.totalorder %s12, 3
      %p67 = por %p65, %p66
      %p68 = scmp.ne.s32.totalorder %s60, %s63
      %p69 = scmp.eq.s32.totalorder %s12, 0
      %p70 = por %p68, %p69
      %p71 = scmp.ne.s32.totalorder %s60, %s63
      %p72 = scmp.eq.s32.totalorder %s17, 3
      %p73 = por %p71, %p72
      %p74 = scmp.ne.s32.totalorder %s63, %s64
      %p75 = scmp.eq.s32.totalorder %s17, 0
      %p76 = por %p74, %p75
      %p77 = scmp.ne.s32.totalorder %s63, %s64
      %p78 = scmp.eq.s32.totalorder %s18, 3
      %p79 = por %p77, %p78
      %p81 = scmp.ne.s32.totalorder %s64, %s80
      %p82 = scmp.eq.s32.totalorder %s18, 0
      %p83 = por %p81, %p82
      %s84 = ssub.s32 %s19, %s31
      %p85 = scmp.eq.s32.totalorder %s84, 0
      %s87 = sadd.s32 %s86, 1
      %s88 = scalar_select %p85, %s86, %s87
      %p91 = pneg %p85
      %p92 = scmp.eq.s32.totalorder %s12, 3
      %p93 = por %p91, %p92
      %p94 = scmp.ne.s32.totalorder %s86, %s89
      %p95 = scmp.eq.s32.totalorder %s12, 0
      %p96 = por %p94, %p95
      %p97 = scmp.ne.s32.totalorder %s86, %s89
      %p98 = scmp.eq.s32.totalorder %s17, 3
      %p99 = por %p97, %p98
      %p100 = scmp.ne.s32.totalorder %s89, %s90
      %p101 = scmp.eq.s32.totalorder %s17, 0
      %p102 = por %p100, %p101
      %p103 = scmp.ne.s32.totalorder %s89, %s90
      %p104 = scmp.eq.s32.totalorder %s18, 3
      %p105 = por %p103, %p104
      %p107 = scmp.ne.s32.totalorder %s90, %s106
      %p108 = scmp.eq.s32.totalorder %s18, 0
      %p109 = por %p107, %p108
      %s110 = ssub.s32 %s20, %s27
      %s111 = ssub.s32 %s19, %s31
      %s112 = sor.u32 %s110, %s111
      %p113 = scmp.eq.s32.totalorder %s112, 0
      %s115 = sadd.s32 %s114, 1
      %s116 = scalar_select %p113, %s114, %s115
      %p119 = pneg %p113
      %p120 = scmp.eq.s32.totalorder %s12, 3
      %p121 = por %p119, %p120
      %p122 = scmp.ne.s32.totalorder %s114, %s117
      %p123 = scmp.eq.s32.totalorder %s12, 0
      %p124 = por %p122, %p123
      %p125 = scmp.ne.s32.totalorder %s114, %s117
      %p126 = scmp.eq.s32.totalorder %s17, 3
      %p127 = por %p125, %p126
      %p128 = scmp.ne.s32.totalorder %s117, %s118
      %p129 = scmp.eq.s32.totalorder %s17, 0
      %p130 = por %p128, %p129
      %p131 = scmp.ne.s32.totalorder %s117, %s118
      %p132 = scmp.eq.s32.totalorder %s18, 3
      %p133 = por %p131, %p132
      %p135 = scmp.ne.s32.totalorder %s118, %s134
      %p136 = scmp.eq.s32.totalorder %s18, 0
      %p137 = por %p135, %p136
      %p138 = scmp.le.s32.totalorder 1, %s12
      %p139 = scmp.lt.s32.totalorder %s12, 5
      %p140 = pnand %p138, %p139
      %p141 = pneg %p140
      // Predicated region
      $region9: #{tpu_custom_call.1} parent=5 // pred_check
        _
      $region10: #{tpu_custom_call.1} parent=5 // pred_check_branch
        %143 = sbr.rel (%p140) target = $region12
      $region11: #{tpu_custom_call.1} parent=5 // pred_region
        %s144 = ssub.s32 %s12, 1
        // Predicated region
        $region13: #{tpu_custom_call.1} parent=11 // pred_check
          %p145 = pneg %p76
        $region14: #{tpu_custom_call.1} parent=11 // pred_check_branch
          %147 = sbr.rel (%p145) target = $region16
        $region15: #{tpu_custom_call.1} parent=11 // pred_region
          %p148 = scmp.lt.s32.totalorder %s21, 0
          %s149 = scalar_select %p148, %s21, 0
          %s150 = smul.addr %s149, 2
          %s151 = scalar_lea.vmem %s1, %s150
        $region16: #{tpu_custom_call.1} parent=11 // pred_fallthru
          _
        // Predicated region
        $region17: #{tpu_custom_call.1} parent=11 // pred_check
          %p152 = pneg %p102
        $region18: #{tpu_custom_call.1} parent=11 // pred_check_branch
          %154 = sbr.rel (%p152) target = $region20
        $region19: #{tpu_custom_call.1} parent=11 // pred_region
          %p155 = scmp.lt.s32.totalorder %s21, 0
          %s156 = scalar_select %p155, %s21, 0
          %s157 = scalar_lea.vmem %s2, %s156
        $region20: #{tpu_custom_call.1} parent=11 // pred_fallthru
          _
      $region12: #{tpu_custom_call.1} parent=5 // pred_fallthru
        _
      %p158 = scmp.lt.s32.totalorder %s12, 4
      // Predicated region
      $region21: #{tpu_custom_call.1} parent=5 // pred_check
        %p159 = pneg %p158
      $region22: #{tpu_custom_call.1} parent=5 // pred_check_branch
        %161 = sbr.rel (%p159) target = $region24
      $region23: #{tpu_custom_call.1} parent=5 // pred_region
        // Predicated region
        $region25: #{tpu_custom_call.1} parent=23 // pred_check
          %p162 = pneg %p44
        $region26: #{tpu_custom_call.1} parent=23 // pred_check_branch
          %164 = sbr.rel (%p162) target = $region28
        $region27: #{tpu_custom_call.1} parent=23 // pred_region
          %s165 = smul.u32 16, %s20
          %p166 = scmp.lt.s32.totalorder %s165, 63
          %s167 = scalar_select %p166, %s165, 63
          %s168 = smul.addr %s167, 4
          %s169 = scalar_lea.vmem %s0, %s168
          %s170 = smul.u32 16, %s20
        $region28: #{tpu_custom_call.1} parent=23 // pred_fallthru
          _
      $region24: #{tpu_custom_call.1} parent=5 // pred_fallthru
        _
      %p171 = scmp.le.s32.totalorder 1, %s12
      %p172 = scmp.lt.s32.totalorder %s12, 5
      %p173 = pnand %p171, %p172
      %p174 = pneg %p173
      // Predicated region
      $region29: #{tpu_custom_call.1} parent=5 // pred_check
        _
      $region30: #{tpu_custom_call.1} parent=5 // pred_check_branch
        %176 = sbr.rel (%p173) target = $region32
      $region31: #{tpu_custom_call.1} parent=5 // pred_region
        %s177 = ssub.s32 %s12, 1
        %s178 = smul.u32 16, %s22
        %p179 = scmp.lt.s32.totalorder %s178, 63
        %s180 = scalar_select %p179, %s178, 63
        %s181 = smul.addr %s180, 4
        %s182 = scalar_lea.vmem %s0, %s181
        %p183 = pneg %p50
        %p184 = pneg %p47
        %p185 = scmp.lt.s32.totalorder %s21, 0
        %s186 = scalar_select %p185, %s21, 0
        %s187 = smul.addr %s186, 2
        %s188 = scalar_lea.vmem %s1, %s187
        %p189 = pneg %p76
        %p190 = pneg %p73
        %p191 = scmp.lt.s32.totalorder %s21, 0
        %s192 = scalar_select %p191, %s21, 0
        %s193 = scalar_lea.vmem %s2, %s192
        %p194 = pneg %p102
        %p195 = pneg %p99
        %p196 = pneg %p130
        %p197 = pneg %p127
        %s198 = sand.u32 %s117, 1
        %s199 = scalar_lea.sflag [#allocation3], %s198
        %s200 = sand.u32 %s117, 1
        %s201 = smul.addr %s200, 64
        %s202 = scalar_lea.vmem [#allocation2], %s201
        %s203 = smul.u32 16, %s22
        %p204 = scmp.lt.s32.totalorder %s203, 63
        %s205 = scalar_select %p204, %s203, 63
        %s206 = smul.addr %s205, 4
        %s207 = scalar_lea.vmem %s0, %s206
        %s208 = smul.u32 16, %s22
        %p209 = scmp.lt.s32.totalorder %s21, 0
        %s210 = scalar_select %p209, %s21, 0
        %s211 = smul.addr %s210, 2
        %s212 = scalar_lea.vmem %s1, %s211
        %p213 = scmp.lt.s32.totalorder %s21, 0
        %s214 = scalar_select %p213, %s21, 0
        %s215 = scalar_lea.vmem %s2, %s214
        %s216 = smul.u32 16, %s22
        %v218 = vld [vmem:[%s207] sm:$0xf]
        %v219 = vld [vmem:[%s207 + $0x4] sm:$0xf]
        %v220 = vld [vmem:[%s207 + $0x8] sm:$0xf]
        %v221 = vld [vmem:[%s207 + $0xc] sm:$0xf]
        %v222 = vld [vmem:[%s207 + $0x10] sm:$0xf]
        %v223 = vld [vmem:[%s207 + $0x14] sm:$0xf]
        %v224 = vld [vmem:[%s207 + $0x18] sm:$0xf]
        %v225 = vld [vmem:[%s207 + $0x1c] sm:$0xf]
        %v226 = vld [vmem:[%s207 + $0x20] sm:$0xf]
        %v227 = vld [vmem:[%s207 + $0x24] sm:$0xf]
        %v228 = vld [vmem:[%s207 + $0x28] sm:$0xf]
        %v229 = vld [vmem:[%s207 + $0x2c] sm:$0xf]
        %v230 = vld [vmem:[%s207 + $0x30] sm:$0xf]
        %v231 = vld [vmem:[%s207 + $0x34] sm:$0xf]
        %v232 = vld [vmem:[%s207 + $0x38] sm:$0xf]
        %v233 = vld [vmem:[%s207 + $0x3c] sm:$0xf]
        %v234 = vld [vmem:[%s212] sm:$0x3]
        %v235 = vld [vmem:[%s215] sm:$0x1]
        %v237 = vlaneseq
        %v238 = vshrl.u32 %v237, 7
        %v239 = vsub.s32 0, %v238
        %v240 = vrot.slane %v235, %v239
        %v258 = vunpack.c.l.b16 %v218
        %v259 = vunpack.c.l.b16 %v219
        %v260 = vunpack.c.l.b16 %v220
        %v261 = vunpack.c.l.b16 %v221
        %v262 = vunpack.c.l.b16 %v222
        %v263 = vunpack.c.l.b16 %v223
        %v264 = vunpack.c.l.b16 %v224
        %v265 = vunpack.c.l.b16 %v225
        %v266 = vunpack.c.l.b16 %v226
        %v267 = vunpack.c.l.b16 %v227
        %v268 = vunpack.c.l.b16 %v228
        %v269 = vunpack.c.l.b16 %v229
        %v270 = vunpack.c.l.b16 %v230
        %v271 = vunpack.c.l.b16 %v231
        %v272 = vunpack.c.l.b16 %v232
        %v273 = vunpack.c.l.b16 %v233
        %v274 = vpack.c.b16 %v259, %v258
        %v275 = vpack.c.b16 %v261, %v260
        %v276 = vpack.c.b16 %v263, %v262
        %v277 = vpack.c.b16 %v265, %v264
        %v278 = vpack.c.b16 %v267, %v266
        %v279 = vpack.c.b16 %v269, %v268
        %v280 = vpack.c.b16 %v271, %v270
        %v281 = vpack.c.b16 %v273, %v272
        %vm282 = vcmask 31744
        %v284 = vsel %vm282, %v274, 0
        %v287 = vsel %vm282, %v275, 0
        %v290 = vsel %vm282, %v276, 0
        %v293 = vsel %vm282, %v277, 0
        %v296 = vsel %vm282, %v278, 0
        %v299 = vsel %vm282, %v279, 0
        %v302 = vsel %vm282, %v280, 0
        %v305 = vsel %vm282, %v281, 0
        %vm307 = vcmask 1041408
        %v309 = vsel %vm307, %v234, 0
        %311 = vmatprep.subr.bf16.mxu0 0
        %312 = vmatpush1.bf16.msra.mxu0 %v309
        %313 = vmatprep.subr.bf16.mxu0 0
        %314 = vmatpush1.bf16.msra.mxu0 0
        %315 = vmatprep.subr.bf16.mxu0 0
        %316 = vmatpush1.bf16.msra.mxu0 0
        %317 = vmatprep.subr.bf16.mxu0 0
        %318 = vmatpush1.bf16.msra.mxu0 0
        %319 = vmatprep.subr.bf16.mxu0 0
        %320 = vmatpush1.bf16.msra.mxu0 0
        %321 = vmatprep.subr.bf16.mxu0 0
        %322 = vmatpush1.bf16.msra.mxu0 0
        %323 = vmatprep.subr.bf16.mxu0 0
        %324 = vmatpush1.bf16.msra.mxu0 0
        %325 = vmatprep.subr.bf16.mxu0 0
        %326 = vmatpush1.bf16.msra.mxu0 0
        %327 = vmatprep.subr.bf16.mxu0 0
        %328 = vmatpush1.bf16.msra.mxu0 0
        %329 = vmatprep.subr.bf16.mxu0 0
        %330 = vmatpush1.bf16.msra.mxu0 0
        %331 = vmatprep.subr.bf16.mxu0 0
        %332 = vmatpush1.bf16.msra.mxu0 0
        %333 = vmatprep.subr.bf16.mxu0 0
        %334 = vmatpush1.bf16.msra.mxu0 0
        %335 = vmatprep.subr.bf16.mxu0 0
        %336 = vmatpush1.bf16.msra.mxu0 0
        %337 = vmatprep.subr.bf16.mxu0 0
        %338 = vmatpush1.bf16.msra.mxu0 0
        %339 = vmatprep.subr.bf16.mxu0 0
        %340 = vmatpush1.bf16.msra.mxu0 0
        %341 = vmatprep.subr.bf16.mxu0 0
        %342 = vmatpush1.bf16.msra.mxu0 0
        %343 = vmatprep.mubr.bf16.mxu0 0
        %344 = vmatmul.mubr.bf16.gmra.mrb[0].mxu0 %v284
        %v345 = vpop.f32.mrb[0].mxu0
        %v346 = vadd.f32 %v240, %v345
        %v347 = vpop.f32.mrb[0].mxu0
        %v348 = vpop.f32.mrb[0].mxu0
        %v349 = vadd.f32 %v240, %v348
        %v350 = vpop.f32.mrb[0].mxu0
        %351 = vmatprep.mubr.bf16.mxu0 0
        %352 = vmatmul.mubr.bf16.gmra.mrb[0].mxu0 %v287
        %v353 = vpop.f32.mrb[0].mxu0
        %v354 = vadd.f32 %v240, %v353
        %v355 = vpop.f32.mrb[0].mxu0
        %v356 = vpop.f32.mrb[0].mxu0
        %v357 = vadd.f32 %v240, %v356
        %v358 = vpop.f32.mrb[0].mxu0
        %359 = vmatprep.mubr.bf16.mxu0 0
        %360 = vmatmul.mubr.bf16.gmra.mrb[0].mxu0 %v290
        %v361 = vpop.f32.mrb[0].mxu0
        %v362 = vadd.f32 %v240, %v361
        %v363 = vpop.f32.mrb[0].mxu0
        %v364 = vpop.f32.mrb[0].mxu0
        %v365 = vadd.f32 %v240, %v364
        %v366 = vpop.f32.mrb[0].mxu0
        %367 = vmatprep.mubr.bf16.mxu0 0
        %368 = vmatmul.mubr.bf16.gmra.mrb[0].mxu0 %v293
        %v369 = vpop.f32.mrb[0].mxu0
        %v370 = vadd.f32 %v240, %v369
        %v371 = vpop.f32.mrb[0].mxu0
        %v372 = vpop.f32.mrb[0].mxu0
        %v373 = vadd.f32 %v240, %v372
        %v374 = vpop.f32.mrb[0].mxu0
        %375 = vmatprep.mubr.bf16.mxu0 0
        %376 = vmatmul.mubr.bf16.gmra.mrb[0].mxu0 %v296
        %v377 = vpop.f32.mrb[0].mxu0
        %v378 = vadd.f32 %v240, %v377
        %v379 = vpop.f32.mrb[0].mxu0
        %v380 = vpop.f32.mrb[0].mxu0
        %v381 = vadd.f32 %v240, %v380
        %v382 = vpop.f32.mrb[0].mxu0
        %383 = vmatprep.mubr.bf16.mxu0 0
        %384 = vmatmul.mubr.bf16.gmra.mrb[0].mxu0 %v299
        %v385 = vpop.f32.mrb[0].mxu0
        %v386 = vadd.f32 %v240, %v385
        %v387 = vpop.f32.mrb[0].mxu0
        %v388 = vpop.f32.mrb[0].mxu0
        %v389 = vadd.f32 %v240, %v388
        %v390 = vpop.f32.mrb[0].mxu0
        %391 = vmatprep.mubr.bf16.mxu0 0
        %392 = vmatmul.mubr.bf16.gmra.mrb[0].mxu0 %v302
        %v393 = vpop.f32.mrb[0].mxu0
        %v394 = vadd.f32 %v240, %v393
        %v395 = vpop.f32.mrb[0].mxu0
        %v396 = vpop.f32.mrb[0].mxu0
        %v397 = vadd.f32 %v240, %v396
        %v398 = vpop.f32.mrb[0].mxu0
        %399 = vmatprep.mubr.bf16.mxu0 0
        %400 = vmatmul.mubr.bf16.gmra.mrb[0].mxu0 %v305
        %v401 = vpop.f32.mrb[0].mxu0
        %v402 = vadd.f32 %v240, %v401
        %v403 = vpop.f32.mrb[0].mxu0
        %v404 = vpop.f32.mrb[0].mxu0
        %v405 = vadd.f32 %v240, %v404
        %v406 = vpop.f32.mrb[0].mxu0
        %407 = vdwg.mxu0
        %v408 = vsub.f32 0.0, %v346
        %v409 = vsub.f32 0.0, %v349
        %v410 = vsub.f32 0.0, %v354
        %v411 = vsub.f32 0.0, %v357
        %v412 = vsub.f32 0.0, %v362
        %v413 = vsub.f32 0.0, %v365
        %v414 = vsub.f32 0.0, %v370
        %v415 = vsub.f32 0.0, %v373
        %v416 = vsub.f32 0.0, %v378
        %v417 = vsub.f32 0.0, %v381
        %v418 = vsub.f32 0.0, %v386
        %v419 = vsub.f32 0.0, %v389
        %v420 = vsub.f32 0.0, %v394
        %v421 = vsub.f32 0.0, %v397
        %v422 = vsub.f32 0.0, %v402
        %v423 = vsub.f32 0.0, %v405
        %v424 = vmul.f32 %v408, 1.442695
        %v425 = vpow.pop %v424
        %v426 = vmul.f32 %v409, 1.442695
        %v427 = vpow.pop %v426
        %v428 = vmul.f32 %v410, 1.442695
        %v429 = vpow.pop %v428
        %v430 = vmul.f32 %v411, 1.442695
        %v431 = vpow.pop %v430
        %v432 = vmul.f32 %v412, 1.442695
        %v433 = vpow.pop %v432
        %v434 = vmul.f32 %v413, 1.442695
        %v435 = vpow.pop %v434
        %v436 = vmul.f32 %v414, 1.442695
        %v437 = vpow.pop %v436
        %v438 = vmul.f32 %v415, 1.442695
        %v439 = vpow.pop %v438
        %v440 = vmul.f32 %v416, 1.442695
        %v441 = vpow.pop %v440
        %v442 = vmul.f32 %v417, 1.442695
        %v443 = vpow.pop %v442
        %v444 = vmul.f32 %v418, 1.442695
        %v445 = vpow.pop %v444
        %v446 = vmul.f32 %v419, 1.442695
        %v447 = vpow.pop %v446
        %v448 = vmul.f32 %v420, 1.442695
        %v449 = vpow.pop %v448
        %v450 = vmul.f32 %v421, 1.442695
        %v451 = vpow.pop %v450
        %v452 = vmul.f32 %v422, 1.442695
        %v453 = vpow.pop %v452
        %v454 = vmul.f32 %v423, 1.442695
        %v455 = vpow.pop %v454
        %v456 = vadd.f32 %v425, 1.0
        %v457 = vadd.f32 %v427, 1.0
        %v458 = vadd.f32 %v429, 1.0
        %v459 = vadd.f32 %v431, 1.0
        %v460 = vadd.f32 %v433, 1.0
        %v461 = vadd.f32 %v435, 1.0
        %v462 = vadd.f32 %v437, 1.0
        %v463 = vadd.f32 %v439, 1.0
        %v464 = vadd.f32 %v441, 1.0
        %v465 = vadd.f32 %v443, 1.0
        %v466 = vadd.f32 %v445, 1.0
        %v467 = vadd.f32 %v447, 1.0
        %v468 = vadd.f32 %v449, 1.0
        %v469 = vadd.f32 %v451, 1.0
        %v470 = vadd.f32 %v453, 1.0
        %v471 = vadd.f32 %v455, 1.0
        %v472 = vrcp.pop %v456
        %v473 = vrcp.pop %v457
        %v474 = vrcp.pop %v458
        %v475 = vrcp.pop %v459
        %v476 = vrcp.pop %v460
        %v477 = vrcp.pop %v461
        %v478 = vrcp.pop %v462
        %v479 = vrcp.pop %v463
        %v480 = vrcp.pop %v464
        %v481 = vrcp.pop %v465
        %v482 = vrcp.pop %v466
        %v483 = vrcp.pop %v467
        %v484 = vrcp.pop %v468
        %v485 = vrcp.pop %v469
        %v486 = vrcp.pop %v470
        %v487 = vrcp.pop %v471
        %v488 = vmul.f32 %v346, %v472
        %v489 = vmul.f32 %v349, %v473
        %v490 = vmul.f32 %v354, %v474
        %v491 = vmul.f32 %v357, %v475
        %v492 = vmul.f32 %v362, %v476
        %v493 = vmul.f32 %v365, %v477
        %v494 = vmul.f32 %v370, %v478
        %v495 = vmul.f32 %v373, %v479
        %v496 = vmul.f32 %v378, %v480
        %v497 = vmul.f32 %v381, %v481
        %v498 = vmul.f32 %v386, %v482
        %v499 = vmul.f32 %v389, %v483
        %v500 = vmul.f32 %v394, %v484
        %v501 = vmul.f32 %v397, %v485
        %v502 = vmul.f32 %v402, %v486
        %v503 = vmul.f32 %v405, %v487
        %v504 = vpack.c.bf16 %v489, %v488
        %v505 = vpack.c.bf16 %v491, %v490
        %v506 = vpack.c.bf16 %v493, %v492
        %v507 = vpack.c.bf16 %v495, %v494
        %v508 = vpack.c.bf16 %v497, %v496
        %v509 = vpack.c.bf16 %v499, %v498
        %v510 = vpack.c.bf16 %v501, %v500
        %v511 = vpack.c.bf16 %v503, %v502
        %v520 = vunpack.c.l.b16 %v504
        %v521 = vunpack.c.h.b16 %v504
        %v522 = vunpack.c.l.b16 %v505
        %v523 = vunpack.c.h.b16 %v505
        %v524 = vunpack.c.l.b16 %v506
        %v525 = vunpack.c.h.b16 %v506
        %v526 = vunpack.c.l.b16 %v507
        %v527 = vunpack.c.h.b16 %v507
        %v528 = vunpack.c.l.b16 %v508
        %v529 = vunpack.c.h.b16 %v508
        %v530 = vunpack.c.l.b16 %v509
        %v531 = vunpack.c.h.b16 %v509
        %v532 = vunpack.c.l.b16 %v510
        %v533 = vunpack.c.h.b16 %v510
        %v534 = vunpack.c.l.b16 %v511
        %v535 = vunpack.c.h.b16 %v511
        %v536 = vpack.c.b16 %v520, %v520
        %v537 = vpack.c.b16 %v521, %v521
        %v538 = vpack.c.b16 %v522, %v522
        %v539 = vpack.c.b16 %v523, %v523
        %v540 = vpack.c.b16 %v524, %v524
        %v541 = vpack.c.b16 %v525, %v525
        %v542 = vpack.c.b16 %v526, %v526
        %v543 = vpack.c.b16 %v527, %v527
        %v544 = vpack.c.b16 %v528, %v528
        %v545 = vpack.c.b16 %v529, %v529
        %v546 = vpack.c.b16 %v530, %v530
        %v547 = vpack.c.b16 %v531, %v531
        %v548 = vpack.c.b16 %v532, %v532
        %v549 = vpack.c.b16 %v533, %v533
        %v550 = vpack.c.b16 %v534, %v534
        %v551 = vpack.c.b16 %v535, %v535
        %568 = vst [vmem:[%s202] sm:$0xf] %v536
        %569 = vst [vmem:[%s202 + $0x4] sm:$0xf] %v537
        %570 = vst [vmem:[%s202 + $0x8] sm:$0xf] %v538
        %571 = vst [vmem:[%s202 + $0xc] sm:$0xf] %v539
        %572 = vst [vmem:[%s202 + $0x10] sm:$0xf] %v540
        %573 = vst [vmem:[%s202 + $0x14] sm:$0xf] %v541
        %574 = vst [vmem:[%s202 + $0x18] sm:$0xf] %v542
        %575 = vst [vmem:[%s202 + $0x1c] sm:$0xf] %v543
        %576 = vst [vmem:[%s202 + $0x20] sm:$0xf] %v544
        %577 = vst [vmem:[%s202 + $0x24] sm:$0xf] %v545
        %578 = vst [vmem:[%s202 + $0x28] sm:$0xf] %v546
        %579 = vst [vmem:[%s202 + $0x2c] sm:$0xf] %v547
        %580 = vst [vmem:[%s202 + $0x30] sm:$0xf] %v548
        %581 = vst [vmem:[%s202 + $0x34] sm:$0xf] %v549
        %582 = vst [vmem:[%s202 + $0x38] sm:$0xf] %v550
        %583 = vst [vmem:[%s202 + $0x3c] sm:$0xf] %v551
        %s584 = sand.u32 %s117, 1
        %s585 = scalar_lea.sflag [#allocation3], %s584
        %s586 = sand.u32 %s117, 1
        %s587 = smul.addr %s586, 64
        %s588 = scalar_lea.vmem [#allocation2], %s587
        // Predicated region
        $region33: #{tpu_custom_call.1} parent=31 // pred_check
          %p589 = pneg %p127
        $region34: #{tpu_custom_call.1} parent=31 // pred_check_branch
          %591 = sbr.rel (%p589) target = $region36
        $region35: #{tpu_custom_call.1} parent=31 // pred_region
          %s592 = smul.u32 16, %s22
          %s594 = ssub.s32 1024, 1024
          %595 = vsyncadd %s585, %s594
          %s596 = sadd.s32 %s21, %s592
          %s597 = smul.addr %s596, 64
          %s598 = scalar_lea.hbm %s3, %s597
          %s599 = sshll.u32 %s588, 4
          %s600 = int_to_ptr.vmem [resolvable:$true] %s599
          %605 = dma.vmem_to_hbm [thread:$0]  %s600, 1024, %s598, %s585, 64, 64, 4
        $region36: #{tpu_custom_call.1} parent=31 // pred_fallthru
          _
      $region32: #{tpu_custom_call.1} parent=5 // pred_fallthru
        _
      %p606 = scmp.le.s32.totalorder 2, %s12
      // Predicated region
      $region37: #{tpu_custom_call.1} parent=5 // pred_check
        %p607 = pneg %p606
      $region38: #{tpu_custom_call.1} parent=5 // pred_check_branch
        %609 = sbr.rel (%p607) target = $region40
      $region39: #{tpu_custom_call.1} parent=5 // pred_region
        %s610 = ssub.s32 %s12, 2
        // Predicated region
        $region41: #{tpu_custom_call.1} parent=39 // pred_check
          %p611 = pneg %p133
        $region42: #{tpu_custom_call.1} parent=39 // pred_check_branch
          %613 = sbr.rel (%p611) target = $region44
        $region43: #{tpu_custom_call.1} parent=39 // pred_region
          %s614 = sand.u32 %s118, 1
          %s615 = scalar_lea.sflag [#allocation3], %s614
          %s616 = sand.u32 %s118, 1
          %s617 = smul.addr %s616, 64
          %s618 = scalar_lea.vmem [#allocation2], %s617
          %619 = dma.done %s615, 1024
        $region44: #{tpu_custom_call.1} parent=39 // pred_fallthru
          _
      $region40: #{tpu_custom_call.1} parent=5 // pred_fallthru
        _
    $region6: #{tpu_custom_call.1} parent=1 // loop_footer
      %s16 = sadd.s32 1, %s12
    $region7: #{tpu_custom_call.1} parent=1 // loop_footer_branch
      %11 = sbr.rel target = $region3
    $region8: #{tpu_custom_call.1} parent=1 // loop_exit
      _
    %620 = vsyncpa [#allocation3], 1
    %s621 = scalar_lea.sflag [#allocation3], 1
    %622 = vsyncpa %s621, 1

</llo_original>
